<compile_context>
chip_gen: v7x
topology: tpu7x:2x2x1
jax: 0.10.0
libtpu: 0.0.40
codegen_flags: <defaults>
</compile_context>

<pallas_src>
import math
import functools

import numpy as np
import jax
import jax.numpy as jnp
from jax import lax
from jax.experimental import pallas as pl
from jax.experimental.pallas import tpu as pltpu


def gaussian_weights(window_size: int, sigma: float):
    g = [math.exp(-((x - window_size // 2) ** 2) / float(2 * sigma ** 2))
         for x in range(window_size)]
    s = sum(g)
    return [v / s for v in g]


def _banded_gaussian(n: int, gauss, pad: int, transpose: bool) -> np.ndarray:
    """(n, n) banded matrix implementing a 1-D 'same' Gaussian conv with zero pad.

    transpose=False (left factor K):   out = K @ x,   K[r, c] = g[c - r + pad]
    transpose=True  (right factor Kt): out = x @ Kt,  Kt[r, c] = g[r - c + pad]
    Out-of-range taps are dropped, which reproduces zero padding exactly.
    """
    ws = len(gauss)
    r = np.arange(n)[:, None]
    c = np.arange(n)[None, :]
    t = (r - c + pad) if transpose else (c - r + pad)
    g = np.asarray(gauss, dtype=np.float64)
    m = np.where((t >= 0) & (t < ws), g[np.clip(t, 0, ws - 1)], 0.0)
    return m.astype(np.float32)


def _block_diag(block: np.ndarray, p: int) -> np.ndarray:
    n = block.shape[0]
    out = np.zeros((p * n, p * n), dtype=block.dtype)
    for j in range(p):
        out[j * n:(j + 1) * n, j * n:(j + 1) * n] = block
    return out


def _ssim_kernel(x1_ref, x2_ref, kw_ref, kht_ref, out_ref, *, H, conv_dtype):
    """Bg packed plane-groups per grid step.

    x1_ref, x2_ref : (Bg, Hp, Wp) packed planes (Wp = p*W, p planes per lane row)
    kw_ref         : (Wp, Wp) block-diagonal banded Gaussian (right factor)
    kht_ref        : (Hp, Hp) banded Gaussian, pre-transposed (right factor)
    out_ref        : (1, Bg, Wp) per-step row-sums (reduced over H only)
    """
    Bg, Hp, Wp = x1_ref.shape

    x1 = x1_ref[...].astype(jnp.float32)
    x2 = x2_ref[...].astype(jnp.float32)

    # Five conv inputs stacked along the leading axis: (5Bg, Hp, Wp).
    # Products are computed in f32; only the matmul operands see conv_dtype.
    s = jnp.concatenate([x1, x2, x1 * x1, x2 * x2, x1 * x2], axis=0)

    # Row (W) pass: ONE big 2-D MXU matmul (Hp % 8 == 0 -> layout-preserving
    # flatten of the leading dims).  Zero padding is folded into kw.
    sr = jnp.dot(s.reshape(5 * Bg * Hp, Wp).astype(conv_dtype),
                 kw_ref[...],
                 preferred_element_type=jnp.float32).reshape(5 * Bg, Hp, Wp)

    # Column (H) pass: transpose each plane so H is the contraction axis, then
    # ONE big 2-D MXU matmul against the resident (Hp, Hp) factor — no
    # broadcast of the Gaussian factor, no per-plane tiny batched matmuls.
    srt = jnp.swapaxes(sr, 1, 2)                                 # (5Bg, Wp, Hp)
    conv_t = jnp.dot(srt.reshape(5 * Bg * Wp, Hp).astype(conv_dtype),
                     kht_ref[...],
                     preferred_element_type=jnp.float32).reshape(5 * Bg, Wp, Hp)

    mu1 = conv_t[0 * Bg:1 * Bg]
    mu2 = conv_t[1 * Bg:2 * Bg]
    e11 = conv_t[2 * Bg:3 * Bg]
    e22 = conv_t[3 * Bg:4 * Bg]
    e12 = conv_t[4 * Bg:5 * Bg]

    mu1_sq = mu1 * mu1
    mu2_sq = mu2 * mu2
    mu1_mu2 = mu1 * mu2
    sigma1_sq = e11 - mu1_sq
    sigma2_sq = e22 - mu2_sq
    sigma12 = e12 - mu1_mu2

    C1 = 0.01 ** 2
    C2 = 0.03 ** 2
    ssim_map = ((2.0 * mu1_mu2 + C1) * (2.0 * sigma12 + C2)) / (
        (mu1_sq + mu2_sq + C1) * (sigma1_sq + sigma2_sq + C2))   # (Bg, Wp, Hp)

    # Mask out padded H rows (lane axis in this layout), fused reduce over H.
    if Hp != H:
        lane = lax.broadcasted_iota(jnp.int32, ssim_map.shape, 2)
        ssim_map = jnp.where(lane < H, ssim_map, 0.0)

    out_ref[0] = jnp.sum(ssim_map, axis=2)                       # (Bg, Wp)


def _vmem_budget_bytes() -> int:
    try:
        cap = int(pltpu.get_tpu_info().vmem_capacity_bytes)
    except Exception:
        cap = 64 * 1024 * 1024      # conservative: v7x per-TensorCore VMEM
    return max(32 * 1024 * 1024, int(0.75 * cap))


def _pick_groups_per_step(n_groups: int, Hp: int, Wp: int,
                          in_bytes: int, vmem_budget_bytes: int) -> int:
    plane = Hp * Wp
    # Live estimate per group per step: the 5-wide conv stack alive ~5x
    # (s, sr, srt, conv_t, sliced components) in f32, ~10 plane-sized
    # elementwise temps, plus 2 inputs x 2 pipeline buffers in input dtype.
    per_group = plane * (5 * 5 * 4 + 10 * 4) + 2 * 2 * plane * in_bytes
    fixed = 2 * 4 * (Wp * Wp + Hp * Hp)          # Gaussian factors (x2 buffers)
    b = (vmem_budget_bytes - fixed) // per_group
    return int(max(1, min(n_groups, b)))


def _pack_planes(x, NCg: int, p: int, Hp: int, G: int, Bg: int):
    """(NC, H, W) -> (G*Bg, Hp, p*W): p planes side by side along lanes."""
    NC, H, W = x.shape
    if NCg * p != NC:
        x = jnp.pad(x, ((0, NCg * p - NC), (0, 0), (0, 0)))
    if Hp != H:
        x = jnp.pad(x, ((0, 0), (0, Hp - H), (0, 0)))
    x = x.reshape(NCg, p, Hp, W).transpose(0, 2, 1, 3).reshape(NCg, Hp, p * W)
    if G * Bg != NCg:
        x = jnp.pad(x, ((0, G * Bg - NCg), (0, 0), (0, 0)))
    return x


def ssim(img1, img2, window_size: int = 11, size_average: bool = True,
         conv_dtype=jnp.float32):
    """JAX/Pallas equivalent of SSIM().forward(img1, img2) for NCHW inputs."""
    N, C, H, W = img1.shape
    NC = N * C
    pad = window_size // 2
    gauss = gaussian_weights(window_size, 1.5)

    # Lane packing factor: p planes per 128-lane row (p=1 for W >= 128).
    p = min(max(1, 128 // W), NC)
    if (p * W) % 8 != 0:            # keep the in-kernel post-transpose reshape
        for q in range(p, 0, -1):   # layout-preserving when possible
            if (q * W) % 8 == 0:
                p = q
                break
    Wp = p * W
    Hp = -(-H // 8) * 8             # pad H to a sublane multiple
    NCg = -(-NC // p)               # packed plane groups

    budget = _vmem_budget_bytes()
    Bg = _pick_groups_per_step(NCg, Hp, Wp, img1.dtype.itemsize, budget)
    if NCg >= 2:                    # keep >= 2 grid steps for v7x's two cores
        Bg = min(Bg, -(-NCg // 2))
    G = -(-NCg // Bg)

    # Banded 1-D Gaussian right-factors with the zero padding folded in.
    kw = jnp.asarray(
        _block_diag(_banded_gaussian(W, gauss, pad, transpose=True), p),
        dtype=conv_dtype)                                       # (Wp, Wp)
    kht = jnp.asarray(_banded_gaussian(Hp, gauss, pad, transpose=True),
                      dtype=conv_dtype)                         # (Hp, Hp)

    x1 = _pack_planes(img1.reshape(NC, H, W), NCg, p, Hp, G, Bg)
    x2 = _pack_planes(img2.reshape(NC, H, W), NCg, p, Hp, G, Bg)

    # TODO(synk): for very large planes (dense Wp x Wp / Hp x Hp factors past
    # the MXU roofline crossover, roughly W > 128..256) tile W and H into
    # 128/256-wide strips with a (window_size-1) halo and banded strip blocks.

    kernel = functools.partial(_ssim_kernel, H=H, conv_dtype=conv_dtype)

    row_sums = pl.pallas_call(
        kernel,
        out_shape=jax.ShapeDtypeStruct((G, Bg, Wp), jnp.float32),
        grid_spec=pltpu.PrefetchScalarGridSpec(
            num_scalar_prefetch=0,
            grid=(G,),
            in_specs=[
                pl.BlockSpec((Bg, Hp, Wp), lambda i: (i, 0, 0)),
                pl.BlockSpec((Bg, Hp, Wp), lambda i: (i, 0, 0)),
                pl.BlockSpec((Wp, Wp), lambda i: (0, 0)),   # grid-invariant
                pl.BlockSpec((Hp, Hp), lambda i: (0, 0)),   # grid-invariant
            ],
            out_specs=pl.BlockSpec((1, Bg, Wp), lambda i: (i, 0, 0)),
        ),
        compiler_params=pltpu.CompilerParams(
            dimension_semantics=("parallel",),       # plane groups independent
            vmem_limit_bytes=int(budget)),
    )(x1, x2, kw, kht)

    # Finish the tiny per-plane reduction in the wrapper (p*W -> per-plane sum).
    plane_sums = row_sums.reshape(G * Bg, p, W).sum(axis=-1).reshape(-1)[:NC]
    per_plane_mean = plane_sums / float(H * W)

    if size_average:
        # all planes have equal size -> mean of per-plane means == global mean
        return jnp.mean(per_plane_mean)
    else:
        # .mean(1).mean(1).mean(1) over (C, H, W) -> per-batch mean
        return jnp.mean(per_plane_mean.reshape(N, C), axis=1)


def _ssim_reference_np(img1, img2, window_size=11):
    """Pure numpy reference matching the PyTorch module (for validation)."""
    x1 = np.asarray(img1, dtype=np.float64)
    x2 = np.asarray(img2, dtype=np.float64)
    _, _, H, W = x1.shape
    pad = window_size // 2
    g = np.asarray(gaussian_weights(window_size, 1.5), dtype=np.float64)
    w2 = np.outer(g, g)

    def conv(x):
        xp = np.pad(x, ((0, 0), (0, 0), (pad, pad), (pad, pad)))
        out = np.zeros_like(x)
        for i in range(window_size):
            for j in range(window_size):
                out += w2[i, j] * xp[:, :, i:i + H, j:j + W]
        return out

    mu1, mu2 = conv(x1), conv(x2)
    mu1_sq, mu2_sq, mu1_mu2 = mu1 * mu1, mu2 * mu2, mu1 * mu2
    s1 = conv(x1 * x1) - mu1_sq
    s2 = conv(x2 * x2) - mu2_sq
    s12 = conv(x1 * x2) - mu1_mu2
    C1, C2 = 0.01 ** 2, 0.03 ** 2
    m = ((2 * mu1_mu2 + C1) * (2 * s12 + C2)) / ((mu1_sq + mu2_sq + C1) * (s1 + s2 + C2))
    return float(m.mean())


if __name__ == "__main__":
    key = jax.random.PRNGKey(0)
    k1, k2 = jax.random.split(key)
    N, C, H, W = 2, 3, 16, 16
    img1 = jax.random.uniform(k1, (N, C, H, W), dtype=jnp.float32)
    img2 = jax.random.uniform(k2, (N, C, H, W), dtype=jnp.float32)

    out = ssim(img1, img2, window_size=11, size_average=True)
    out = jax.block_until_ready(out)
    assert out.shape == () and bool(jnp.isfinite(out))

    ref = _ssim_reference_np(np.asarray(img1), np.asarray(img2), window_size=11)
    assert abs(float(out) - ref) < 1e-3, (float(out), ref)

    out_nb = ssim(img1, img2, window_size=11, size_average=False)
    out_nb = jax.block_until_ready(out_nb)
    assert out_nb.shape == (N,) and bool(jnp.all(jnp.isfinite(out_nb)))
    assert abs(float(jnp.mean(out_nb)) - ref) < 1e-3, (np.asarray(out_nb), ref)

    print("KERNEL_OK")
</pallas_src>

<mosaic_0001>
module attributes {stable_mosaic.version = 11 : i64} {
  func.func @_ssim_kernel(%arg0: i32, %arg1: memref<1x16x96xf32, #tpu.memory_space<vmem>>, %arg2: memref<1x16x96xf32, #tpu.memory_space<vmem>>, %arg3: memref<96x96xf32, #tpu.memory_space<vmem>>, %arg4: memref<16x16xf32, #tpu.memory_space<vmem>>, %arg5: memref<1x1x96xf32, #tpu.memory_space<vmem>>) attributes {dimension_semantics = [#tpu.dimension_semantics<parallel>], iteration_bounds = array<i64: 1>, scalar_prefetch = 0 : i64, scratch_operands = 0 : i64, tpu.core_type = #tpu.core_type<tc>, window_params = [{transform_indices = @transform_0, window_bounds = array<i64: 1, 16, 96>}, {transform_indices = @transform_1, window_bounds = array<i64: 1, 16, 96>}, {pipeline_mode = #tpu.pipeline_mode<synchronous>, transform_indices = @transform_2, window_bounds = array<i64: 96, 96>}, {pipeline_mode = #tpu.pipeline_mode<synchronous>, transform_indices = @transform_3, window_bounds = array<i64: 16, 16>}, {transform_indices = @transform_4, window_bounds = array<i64: 1, 1, 96>}]} {
    %c0 = arith.constant 0 : index
    %c0_0 = arith.constant 0 : index
    %c0_1 = arith.constant 0 : index
    %0 = vector.load %arg1[%c0, %c0_0, %c0_1] : memref<1x16x96xf32, #tpu.memory_space<vmem>>, vector<1x16x96xf32>
    %c0_2 = arith.constant 0 : index
    %c0_3 = arith.constant 0 : index
    %c0_4 = arith.constant 0 : index
    %1 = vector.load %arg2[%c0_2, %c0_3, %c0_4] : memref<1x16x96xf32, #tpu.memory_space<vmem>>, vector<1x16x96xf32>
    %2 = arith.mulf %0, %0 : vector<1x16x96xf32>
    %3 = arith.mulf %1, %1 : vector<1x16x96xf32>
    %4 = arith.mulf %0, %1 : vector<1x16x96xf32>
    %5 = tpu.concatenate %0, %1, %2, %3, %4 in 0 : vector<1x16x96xf32>, vector<1x16x96xf32>, vector<1x16x96xf32>, vector<1x16x96xf32>, vector<1x16x96xf32> -> vector<5x16x96xf32>
    %6 = vector.shape_cast %5 : vector<5x16x96xf32> to vector<80x96xf32>
    %c0_5 = arith.constant 0 : index
    %c0_6 = arith.constant 0 : index
    %7 = vector.load %arg3[%c0_5, %c0_6] : memref<96x96xf32, #tpu.memory_space<vmem>>, vector<96x96xf32>
    %cst = arith.constant dense<0.000000e+00> : vector<80x96xf32>
    %8 = tpu.matmul %6, %7, %cst {dimension_numbers = #tpu.dot_dimension_numbers<[1], [0], [0], [1], [0, 0, 1, 1], [], []>} : vector<80x96xf32>, vector<96x96xf32>, vector<80x96xf32> -> vector<80x96xf32>
    %9 = vector.shape_cast %8 : vector<80x96xf32> to vector<5x16x96xf32>
    %10 = tpu.transpose %9, [0, 2, 1] : vector<5x16x96xf32> -> vector<5x96x16xf32>
    %11 = vector.shape_cast %10 : vector<5x96x16xf32> to vector<480x16xf32>
    %c0_7 = arith.constant 0 : index
    %c0_8 = arith.constant 0 : index
    %12 = vector.load %arg4[%c0_7, %c0_8] : memref<16x16xf32, #tpu.memory_space<vmem>>, vector<16x16xf32>
    %cst_9 = arith.constant dense<0.000000e+00> : vector<480x16xf32>
    %13 = tpu.matmul %11, %12, %cst_9 {dimension_numbers = #tpu.dot_dimension_numbers<[1], [0], [0], [1], [0, 0, 1, 1], [], []>} : vector<480x16xf32>, vector<16x16xf32>, vector<480x16xf32> -> vector<480x16xf32>
    %14 = vector.shape_cast %13 : vector<480x16xf32> to vector<5x96x16xf32>
    %15 = vector.extract_strided_slice %14 {offsets = [0, 0, 0], sizes = [1, 96, 16], strides = [1, 1, 1]} : vector<5x96x16xf32> to vector<1x96x16xf32>
    %16 = vector.extract_strided_slice %14 {offsets = [1, 0, 0], sizes = [1, 96, 16], strides = [1, 1, 1]} : vector<5x96x16xf32> to vector<1x96x16xf32>
    %17 = vector.extract_strided_slice %14 {offsets = [2, 0, 0], sizes = [1, 96, 16], strides = [1, 1, 1]} : vector<5x96x16xf32> to vector<1x96x16xf32>
    %18 = vector.extract_strided_slice %14 {offsets = [3, 0, 0], sizes = [1, 96, 16], strides = [1, 1, 1]} : vector<5x96x16xf32> to vector<1x96x16xf32>
    %19 = vector.extract_strided_slice %14 {offsets = [4, 0, 0], sizes = [1, 96, 16], strides = [1, 1, 1]} : vector<5x96x16xf32> to vector<1x96x16xf32>
    %20 = arith.mulf %15, %15 : vector<1x96x16xf32>
    %21 = arith.mulf %16, %16 : vector<1x96x16xf32>
    %22 = arith.mulf %15, %16 : vector<1x96x16xf32>
    %23 = arith.subf %17, %20 : vector<1x96x16xf32>
    %24 = arith.subf %18, %21 : vector<1x96x16xf32>
    %25 = arith.subf %19, %22 : vector<1x96x16xf32>
    %cst_10 = arith.constant 2.000000e+00 : f32
    %26 = vector.broadcast %cst_10 : f32 to vector<1x96x16xf32>
    %27 = arith.mulf %26, %22 : vector<1x96x16xf32>
    %cst_11 = arith.constant 9.99999974E-5 : f32
    %28 = vector.broadcast %cst_11 : f32 to vector<1x96x16xf32>
    %29 = arith.addf %27, %28 : vector<1x96x16xf32>
    %cst_12 = arith.constant 2.000000e+00 : f32
    %30 = vector.broadcast %cst_12 : f32 to vector<1x96x16xf32>
    %31 = arith.mulf %30, %25 : vector<1x96x16xf32>
    %cst_13 = arith.constant 8.99999984E-4 : f32
    %32 = vector.broadcast %cst_13 : f32 to vector<1x96x16xf32>
    %33 = arith.addf %31, %32 : vector<1x96x16xf32>
    %34 = arith.mulf %29, %33 : vector<1x96x16xf32>
    %35 = arith.addf %20, %21 : vector<1x96x16xf32>
    %cst_14 = arith.constant 9.99999974E-5 : f32
    %36 = vector.broadcast %cst_14 : f32 to vector<1x96x16xf32>
    %37 = arith.addf %35, %36 : vector<1x96x16xf32>
    %38 = arith.addf %23, %24 : vector<1x96x16xf32>
    %cst_15 = arith.constant 8.99999984E-4 : f32
    %39 = vector.broadcast %cst_15 : f32 to vector<1x96x16xf32>
    %40 = arith.addf %38, %39 : vector<1x96x16xf32>
    %41 = arith.mulf %37, %40 : vector<1x96x16xf32>
    %42 = arith.divf %34, %41 : vector<1x96x16xf32>
    %cst_16 = arith.constant dense<0.000000e+00> : vector<1x96xf32>
    %43 = vector.multi_reduction <add>, %42, %cst_16 [2] : vector<1x96x16xf32> to vector<1x96xf32>
    %c0_17 = arith.constant 0 : index
    %c0_18 = arith.constant 0 : index
    %c0_19 = arith.constant 0 : index
    %44 = vector.load %arg5[%c0_17, %c0_18, %c0_19] : memref<1x1x96xf32, #tpu.memory_space<vmem>>, vector<1x1x96xf32>
    %45 = vector.shape_cast %44 : vector<1x1x96xf32> to vector<1x96xf32>
    %46 = vector.shape_cast %43 : vector<1x96xf32> to vector<1x1x96xf32>
    tpu.vector_store %arg5[%c0_17, %c0_18, %c0_19], %46 {strides = array<i32>} : memref<1x1x96xf32, #tpu.memory_space<vmem>>, vector<1x1x96xf32>,
    return
  }
  func.func @transform_0(%arg0: i32) -> (i32, i32, i32) {
    %c0_i32 = arith.constant 0 : i32
    %c0_i32_0 = arith.constant 0 : i32
    %c0_i32_1 = arith.constant 0 : i32
    return %arg0, %c0_i32, %c0_i32_0 : i32, i32, i32
  }
  func.func @transform_1(%arg0: i32) -> (i32, i32, i32) {
    %c0_i32 = arith.constant 0 : i32
    %c0_i32_0 = arith.constant 0 : i32
    %c0_i32_1 = arith.constant 0 : i32
    return %arg0, %c0_i32, %c0_i32_0 : i32, i32, i32
  }
  func.func @transform_2(%arg0: i32) -> (i32, i32) {
    %c0_i32 = arith.constant 0 : i32
    %c0_i32_0 = arith.constant 0 : i32
    %c0_i32_1 = arith.constant 0 : i32
    return %c0_i32, %c0_i32_0 : i32, i32
  }
  func.func @transform_3(%arg0: i32) -> (i32, i32) {
    %c0_i32 = arith.constant 0 : i32
    %c0_i32_0 = arith.constant 0 : i32
    %c0_i32_1 = arith.constant 0 : i32
    return %c0_i32, %c0_i32_0 : i32, i32
  }
  func.func @transform_4(%arg0: i32) -> (i32, i32, i32) {
    %c0_i32 = arith.constant 0 : i32
    %c0_i32_0 = arith.constant 0 : i32
    %c0_i32_1 = arith.constant 0 : i32
    return %arg0, %c0_i32, %c0_i32_0 : i32, i32, i32
  }
}

</mosaic_0001>

<llo_original>
// kernel: tpu_custom_call.1
$region0: #{tpu_custom_call.1}
  #allocation0 [shape = 'u32[]', space=smem, size = 0x4, offset = 0x4, fixed_abs, tag = 'smem constant byte address 0x4 - core index']
  #allocation1 [shape = 'u32[144,128]{1,0:T(1,128)}', space=vmem, size = 0x12000, scoped, tag = 'internal scratch']
  %s0 = inlined_call_operand.hbm [shape: f32[1,16,96], index: 0, kind: input, shape index: {}]
  %s1 = inlined_call_operand.hbm [shape: f32[1,16,96], index: 1, kind: input, shape index: {}]
  %s2 = inlined_call_operand.hbm [shape: f32[96,96], index: 2, kind: input, shape index: {}]
  %s3 = inlined_call_operand.hbm [shape: f32[16,16], index: 3, kind: input, shape index: {}]
  %s4 = inlined_call_operand.hbm [shape: f32[1,1,96], index: 4, kind: output, shape index: {}]
  %s5 = sld [smem:[#allocation0]]
  $region42: #{tpu_custom_call.1} parent=0
    _
  %s7 = ssub.s32 1, %s5
  %s8 = scalar_select 0, %s7, %s5
  $region1: #{tpu_custom_call.1} parent=0
    #allocation2 [shape = 'u8[8192]{0}', space=vmem, size = 0x2000, scoped, tag = 'input window, operand 0, single buffered']
    #allocation3 [shape = 's32[1]{0}', space=sflag, size = 0x4, scoped, tag = 'scoped memory for tpu_custom_call.1']
    #allocation4 [shape = 's32[1]{0}', space=sflag, size = 0x4, scoped, tag = 'scoped memory for tpu_custom_call.1']
    #allocation5 [shape = 'u8[8192]{0}', space=vmem, size = 0x2000, scoped, tag = 'input window, operand 1, single buffered']
    #allocation6 [shape = 's32[1]{0}', space=sflag, size = 0x4, scoped, tag = 'scoped memory for tpu_custom_call.1']
    #allocation7 [shape = 'u8[49152]{0}', space=vmem, size = 0xc000, scoped, tag = 'input window, operand 2, single buffered']
    #allocation8 [shape = 'u8[8192]{0}', space=vmem, size = 0x2000, scoped, tag = 'input window, operand 3, single buffered']
    #allocation9 [shape = 's32[1]{0}', space=sflag, size = 0x4, scoped, tag = 'scoped memory for tpu_custom_call.1']
    #allocation10 [shape = 'u8[512]{0}', space=vmem, size = 0x400, scoped, tag = 'output window, operand 0, single buffered']
    %9 = vsyncpa [#allocation3], 0
    %10 = vsyncpa [#allocation6], 0
    %11 = vsyncpa [#allocation9], 0
    %12 = vsyncpa [#allocation4], 0
    // Predicated region
    $region2: #{tpu_custom_call.1} parent=1 // pred_check
      _
    $region3: #{tpu_custom_call.1} parent=1 // pred_check_branch
      %14 = sbr.rel (0) target = $region5
    $region4: #{tpu_custom_call.1} parent=1 // pred_region
      %s16 = ssub.s32 256, 256
      %17 = vsyncadd [#allocation3], %s16
      %s18 = sshll.u32 [#allocation2], 4
      %s19 = int_to_ptr.vmem [resolvable:$true] %s18
      %24 = dma.hbm_to_vmem [thread:$0]  %s0, 256, %s19, [#allocation3], 128, 128, 8
    $region5: #{tpu_custom_call.1} parent=1 // pred_fallthru
      _
    // Predicated region
    $region6: #{tpu_custom_call.1} parent=1 // pred_check
      _
    $region7: #{tpu_custom_call.1} parent=1 // pred_check_branch
      %26 = sbr.rel (0) target = $region9
    $region8: #{tpu_custom_call.1} parent=1 // pred_region
      %s28 = ssub.s32 256, 256
      %29 = vsyncadd [#allocation6], %s28
      %s30 = sshll.u32 [#allocation5], 4
      %s31 = int_to_ptr.vmem [resolvable:$true] %s30
      %36 = dma.hbm_to_vmem [thread:$0]  %s1, 256, %s31, [#allocation6], 128, 128, 8
    $region9: #{tpu_custom_call.1} parent=1 // pred_fallthru
      _
    // Predicated region
    $region10: #{tpu_custom_call.1} parent=1 // pred_check
      _
    $region11: #{tpu_custom_call.1} parent=1 // pred_check_branch
      %38 = sbr.rel (0) target = $region13
    $region12: #{tpu_custom_call.1} parent=1 // pred_region
      %s40 = ssub.s32 1536, 1536
      %41 = vsyncadd [#allocation6], %s40
      %s42 = sshll.u32 [#allocation7], 4
      %s43 = int_to_ptr.vmem [resolvable:$true] %s42
      %48 = dma.hbm_to_vmem [thread:$0]  %s2, 1536, %s43, [#allocation6], 128, 128, 8
    $region13: #{tpu_custom_call.1} parent=1 // pred_fallthru
      _
    // Predicated region
    $region14: #{tpu_custom_call.1} parent=1 // pred_check
      _
    $region15: #{tpu_custom_call.1} parent=1 // pred_check_branch
      %50 = sbr.rel (0) target = $region17
    $region16: #{tpu_custom_call.1} parent=1 // pred_region
      %s52 = ssub.s32 256, 256
      %53 = vsyncadd [#allocation9], %s52
      %s54 = sshll.u32 [#allocation8], 4
      %s55 = int_to_ptr.vmem [resolvable:$true] %s54
      %60 = dma.hbm_to_vmem [thread:$0]  %s3, 256, %s55, [#allocation9], 128, 128, 8
    $region17: #{tpu_custom_call.1} parent=1 // pred_fallthru
      _
    // Predicated region
    $region18: #{tpu_custom_call.1} parent=1 // pred_check
      _
    $region19: #{tpu_custom_call.1} parent=1 // pred_check_branch
      %62 = sbr.rel (0) target = $region21
    $region20: #{tpu_custom_call.1} parent=1 // pred_region
      %63 = dma.done [#allocation3], 256
    $region21: #{tpu_custom_call.1} parent=1 // pred_fallthru
      _
    // Predicated region
    $region22: #{tpu_custom_call.1} parent=1 // pred_check
      _
    $region23: #{tpu_custom_call.1} parent=1 // pred_check_branch
      %65 = sbr.rel (0) target = $region25
    $region24: #{tpu_custom_call.1} parent=1 // pred_region
      %66 = dma.done [#allocation6], 256
    $region25: #{tpu_custom_call.1} parent=1 // pred_fallthru
      _
    // Predicated region
    $region26: #{tpu_custom_call.1} parent=1 // pred_check
      _
    $region27: #{tpu_custom_call.1} parent=1 // pred_check_branch
      %68 = sbr.rel (0) target = $region29
    $region28: #{tpu_custom_call.1} parent=1 // pred_region
      %69 = dma.done [#allocation6], 1536
    $region29: #{tpu_custom_call.1} parent=1 // pred_fallthru
      _
    // Predicated region
    $region30: #{tpu_custom_call.1} parent=1 // pred_check
      _
    $region31: #{tpu_custom_call.1} parent=1 // pred_check_branch
      %71 = sbr.rel (0) target = $region33
    $region32: #{tpu_custom_call.1} parent=1 // pred_region
      %72 = dma.done [#allocation9], 256
    $region33: #{tpu_custom_call.1} parent=1 // pred_fallthru
      _
    %v73 = vld [vmem:[#allocation2] sm:$0xff]
    %v74 = vld [vmem:[#allocation2 + $0x8] sm:$0xff]
    %v75 = vld [vmem:[#allocation5] sm:$0xff]
    %v76 = vld [vmem:[#allocation5 + $0x8] sm:$0xff]
    %v77 = vmul.f32 %v73, %v73
    %v78 = vmul.f32 %v74, %v74
    %v79 = vmul.f32 %v75, %v75
    %v80 = vmul.f32 %v76, %v76
    %v81 = vmul.f32 %v73, %v75
    %v82 = vmul.f32 %v74, %v76
    %v83 = vld [vmem:[#allocation7] sm:$0xff]
    %v84 = vld [vmem:[#allocation7 + $0x8] sm:$0xff]
    %v85 = vld [vmem:[#allocation7 + $0x10] sm:$0xff]
    %v86 = vld [vmem:[#allocation7 + $0x18] sm:$0xff]
    %v87 = vld [vmem:[#allocation7 + $0x20] sm:$0xff]
    %v88 = vld [vmem:[#allocation7 + $0x28] sm:$0xff]
    %v89 = vld [vmem:[#allocation7 + $0x30] sm:$0xff]
    %v90 = vld [vmem:[#allocation7 + $0x38] sm:$0xff]
    %v91 = vld [vmem:[#allocation7 + $0x40] sm:$0xff]
    %v92 = vld [vmem:[#allocation7 + $0x48] sm:$0xff]
    %v93 = vld [vmem:[#allocation7 + $0x50] sm:$0xff]
    %v94 = vld [vmem:[#allocation7 + $0x58] sm:$0xff]
    %vm95 = vcmask 785408
    %v97 = vsel %vm95, %v73, 0
    %v100 = vsel %vm95, %v74, 0
    %v103 = vsel %vm95, %v75, 0
    %v106 = vsel %vm95, %v76, 0
    %v109 = vsel %vm95, %v77, 0
    %v112 = vsel %vm95, %v78, 0
    %v115 = vsel %vm95, %v79, 0
    %v118 = vsel %vm95, %v80, 0
    %v121 = vsel %vm95, %v81, 0
    %v124 = vsel %vm95, %v82, 0
    %126 = vmatprep.subr.mxu0 0.0
    %127 = vmatpush1.msra.mxu0 %v83
    %128 = vmatprep.subr.mxu0 0.0
    %129 = vmatpush1.msra.mxu0 %v84
    %130 = vmatprep.subr.mxu0 0.0
    %131 = vmatpush1.msra.mxu0 %v85
    %132 = vmatprep.subr.mxu0 0.0
    %133 = vmatpush1.msra.mxu0 %v86
    %134 = vmatprep.subr.mxu0 0.0
    %135 = vmatpush1.msra.mxu0 %v87
    %136 = vmatprep.subr.mxu0 0.0
    %137 = vmatpush1.msra.mxu0 %v88
    %138 = vmatprep.subr.mxu0 0.0
    %139 = vmatpush1.msra.mxu0 %v89
    %140 = vmatprep.subr.mxu0 0.0
    %141 = vmatpush1.msra.mxu0 %v90
    %142 = vmatprep.subr.mxu0 0.0
    %143 = vmatpush1.msra.mxu0 %v91
    %144 = vmatprep.subr.mxu0 0.0
    %145 = vmatpush1.msra.mxu0 %v92
    %146 = vmatprep.subr.mxu0 0.0
    %147 = vmatpush1.msra.mxu0 %v93
    %148 = vmatprep.subr.mxu0 0.0
    %149 = vmatpush1.msra.mxu0 %v94
    %150 = vmatprep.subr.mxu0 0.0
    %151 = vmatpush1.msra.mxu0 0.0
    %152 = vmatprep.subr.mxu0 0.0
    %153 = vmatpush1.msra.mxu0 0.0
    %154 = vmatprep.subr.mxu0 0.0
    %155 = vmatpush1.msra.mxu0 0.0
    %156 = vmatprep.subr.mxu0 0.0
    %157 = vmatpush1.msra.mxu0 0.0
    %158 = vmatprep.subr.mxu0 0.0
    %159 = vmatpush1.msra.mxu0 0.0
    %160 = vmatprep.subr.mxu0 0.0
    %161 = vmatpush1.msra.mxu0 0.0
    %162 = vmatprep.subr.mxu0 0.0
    %163 = vmatpush1.msra.mxu0 0.0
    %164 = vmatprep.subr.mxu0 0.0
    %165 = vmatpush1.msra.mxu0 0.0
    %166 = vmatprep.subr.mxu0 0.0
    %167 = vmatpush1.msra.mxu0 0.0
    %168 = vmatprep.subr.mxu0 0.0
    %169 = vmatpush1.msra.mxu0 0.0
    %170 = vmatprep.subr.mxu0 0.0
    %171 = vmatpush1.msra.mxu0 0.0
    %172 = vmatprep.subr.mxu0 0.0
    %173 = vmatpush1.msra.mxu0 0.0
    %174 = vmatprep.subr.mxu0 0.0
    %175 = vmatpush1.msra.mxu0 0.0
    %176 = vmatprep.subr.mxu0 0.0
    %177 = vmatpush1.msra.mxu0 0.0
    %178 = vmatprep.subr.mxu0 0.0
    %179 = vmatpush1.msra.mxu0 0.0
    %180 = vmatprep.subr.mxu0 0.0
    %181 = vmatpush1.msra.mxu0 0.0
    %182 = vmatprep.subr.mxu0 0.0
    %183 = vmatpush1.msra.mxu0 0.0
    %184 = vmatprep.subr.mxu0 0.0
    %185 = vmatpush1.msra.mxu0 0.0
    %186 = vmatprep.subr.mxu0 0.0
    %187 = vmatpush1.msra.mxu0 0.0
    %188 = vmatprep.subr.mxu0 0.0
    %189 = vmatpush1.msra.mxu0 0.0
    %190 = vmatprep.mubr.f32.mxu0 0.0
    %191 = vmatmul.mubr.f32.gmra.mrb[0].mxu0 %v97
    %v192 = vpop.f32.mrb[0].mxu0
    %v193 = vadd.f32 0.0, %v192
    %v194 = vpop.f32.mrb[0].mxu0
    %195 = vmatprep.mubr.f32.mxu0 0.0
    %196 = vmatmul.mubr.f32.gmra.mrb[0].mxu0 %v100
    %v197 = vpop.f32.mrb[0].mxu0
    %v198 = vadd.f32 0.0, %v197
    %v199 = vpop.f32.mrb[0].mxu0
    %200 = vmatprep.mubr.f32.mxu0 0.0
    %201 = vmatmul.mubr.f32.gmra.mrb[0].mxu0 %v103
    %v202 = vpop.f32.mrb[0].mxu0
    %v203 = vadd.f32 0.0, %v202
    %v204 = vpop.f32.mrb[0].mxu0
    %205 = vmatprep.mubr.f32.mxu0 0.0
    %206 = vmatmul.mubr.f32.gmra.mrb[0].mxu0 %v106
    %v207 = vpop.f32.mrb[0].mxu0
    %v208 = vadd.f32 0.0, %v207
    %v209 = vpop.f32.mrb[0].mxu0
    %210 = vmatprep.mubr.f32.mxu0 0.0
    %211 = vmatmul.mubr.f32.gmra.mrb[0].mxu0 %v109
    %v212 = vpop.f32.mrb[0].mxu0
    %v213 = vadd.f32 0.0, %v212
    %v214 = vpop.f32.mrb[0].mxu0
    %215 = vmatprep.mubr.f32.mxu0 0.0
    %216 = vmatmul.mubr.f32.gmra.mrb[0].mxu0 %v112
    %v217 = vpop.f32.mrb[0].mxu0
    %v218 = vadd.f32 0.0, %v217
    %v219 = vpop.f32.mrb[0].mxu0
    %220 = vmatprep.mubr.f32.mxu0 0.0
    %221 = vmatmul.mubr.f32.gmra.mrb[0].mxu0 %v115
    %v222 = vpop.f32.mrb[0].mxu0
    %v223 = vadd.f32 0.0, %v222
    %v224 = vpop.f32.mrb[0].mxu0
    %225 = vmatprep.mubr.f32.mxu0 0.0
    %226 = vmatmul.mubr.f32.gmra.mrb[0].mxu0 %v118
    %v227 = vpop.f32.mrb[0].mxu0
    %v228 = vadd.f32 0.0, %v227
    %v229 = vpop.f32.mrb[0].mxu0
    %230 = vmatprep.mubr.f32.mxu0 0.0
    %231 = vmatmul.mubr.f32.gmra.mrb[0].mxu0 %v121
    %v232 = vpop.f32.mrb[0].mxu0
    %v233 = vadd.f32 0.0, %v232
    %v234 = vpop.f32.mrb[0].mxu0
    %235 = vmatprep.mubr.f32.mxu0 0.0
    %236 = vmatmul.mubr.f32.gmra.mrb[0].mxu0 %v124
    %v237 = vpop.f32.mrb[0].mxu0
    %v238 = vadd.f32 0.0, %v237
    %v239 = vpop.f32.mrb[0].mxu0
    %240 = vdwg.mxu0
    %241 = vxpose.xlu0.b32.start [1/16] %v193, 128
    %242 = vxpose.xlu0.b32.cont [2/16] %v198, 128
    %243 = vxpose.xlu0.b32.cont [3/16] 0.0, 128
    %244 = vxpose.xlu0.b32.cont [4/16] 0.0, 128
    %245 = vxpose.xlu0.b32.cont [5/16] 0.0, 128
    %246 = vxpose.xlu0.b32.cont [6/16] 0.0, 128
    %247 = vxpose.xlu0.b32.cont [7/16] 0.0, 128
    %248 = vxpose.xlu0.b32.cont [8/16] 0.0, 128
    %249 = vxpose.xlu0.b32.cont [9/16] 0.0, 128
    %250 = vxpose.xlu0.b32.cont [10/16] 0.0, 128
    %251 = vxpose.xlu0.b32.cont [11/16] 0.0, 128
    %252 = vxpose.xlu0.b32.cont [12/16] 0.0, 128
    %253 = vxpose.xlu0.b32.cont [13/16] 0.0, 128
    %254 = vxpose.xlu0.b32.cont [14/16] 0.0, 128
    %255 = vxpose.xlu0.b32.cont [15/16] 0.0, 128
    %256 = vxpose.xlu0.b32.end [16/16] 0.0, 128
    %v257 = vpop.trf.xlu0
    %v258 = vpop.trf.xlu0
    %v259 = vpop.trf.xlu0
    %v260 = vpop.trf.xlu0
    %v261 = vpop.trf.xlu0
    %v262 = vpop.trf.xlu0
    %v263 = vpop.trf.xlu0
    %v264 = vpop.trf.xlu0
    %v265 = vpop.trf.xlu0
    %v266 = vpop.trf.xlu0
    %v267 = vpop.trf.xlu0
    %v268 = vpop.trf.xlu0
    %v269 = vpop.trf.xlu0
    %v270 = vpop.trf.xlu0
    %v271 = vpop.trf.xlu0
    %v272 = vpop.trf.xlu0
    %273 = vxpose.xlu0.b32.start [1/16] %v203, 128
    %274 = vxpose.xlu0.b32.cont [2/16] %v208, 128
    %275 = vxpose.xlu0.b32.cont [3/16] 0.0, 128
    %276 = vxpose.xlu0.b32.cont [4/16] 0.0, 128
    %277 = vxpose.xlu0.b32.cont [5/16] 0.0, 128
    %278 = vxpose.xlu0.b32.cont [6/16] 0.0, 128
    %279 = vxpose.xlu0.b32.cont [7/16] 0.0, 128
    %280 = vxpose.xlu0.b32.cont [8/16] 0.0, 128
    %281 = vxpose.xlu0.b32.cont [9/16] 0.0, 128
    %282 = vxpose.xlu0.b32.cont [10/16] 0.0, 128
    %283 = vxpose.xlu0.b32.cont [11/16] 0.0, 128
    %284 = vxpose.xlu0.b32.cont [12/16] 0.0, 128
    %285 = vxpose.xlu0.b32.cont [13/16] 0.0, 128
    %286 = vxpose.xlu0.b32.cont [14/16] 0.0, 128
    %287 = vxpose.xlu0.b32.cont [15/16] 0.0, 128
    %288 = vxpose.xlu0.b32.end [16/16] 0.0, 128
    %v289 = vpop.trf.xlu0
    %v290 = vpop.trf.xlu0
    %v291 = vpop.trf.xlu0
    %v292 = vpop.trf.xlu0
    %v293 = vpop.trf.xlu0
    %v294 = vpop.trf.xlu0
    %v295 = vpop.trf.xlu0
    %v296 = vpop.trf.xlu0
    %v297 = vpop.trf.xlu0
    %v298 = vpop.trf.xlu0
    %v299 = vpop.trf.xlu0
    %v300 = vpop.trf.xlu0
    %v301 = vpop.trf.xlu0
    %v302 = vpop.trf.xlu0
    %v303 = vpop.trf.xlu0
    %v304 = vpop.trf.xlu0
    %305 = vxpose.xlu0.b32.start [1/16] %v213, 128
    %306 = vxpose.xlu0.b32.cont [2/16] %v218, 128
    %307 = vxpose.xlu0.b32.cont [3/16] 0.0, 128
    %308 = vxpose.xlu0.b32.cont [4/16] 0.0, 128
    %309 = vxpose.xlu0.b32.cont [5/16] 0.0, 128
    %310 = vxpose.xlu0.b32.cont [6/16] 0.0, 128
    %311 = vxpose.xlu0.b32.cont [7/16] 0.0, 128
    %312 = vxpose.xlu0.b32.cont [8/16] 0.0, 128
    %313 = vxpose.xlu0.b32.cont [9/16] 0.0, 128
    %314 = vxpose.xlu0.b32.cont [10/16] 0.0, 128
    %315 = vxpose.xlu0.b32.cont [11/16] 0.0, 128
    %316 = vxpose.xlu0.b32.cont [12/16] 0.0, 128
    %317 = vxpose.xlu0.b32.cont [13/16] 0.0, 128
    %318 = vxpose.xlu0.b32.cont [14/16] 0.0, 128
    %319 = vxpose.xlu0.b32.cont [15/16] 0.0, 128
    %320 = vxpose.xlu0.b32.end [16/16] 0.0, 128
    %v321 = vpop.trf.xlu0
    %v322 = vpop.trf.xlu0
    %v323 = vpop.trf.xlu0
    %v324 = vpop.trf.xlu0
    %v325 = vpop.trf.xlu0
    %v326 = vpop.trf.xlu0
    %v327 = vpop.trf.xlu0
    %v328 = vpop.trf.xlu0
    %v329 = vpop.trf.xlu0
    %v330 = vpop.trf.xlu0
    %v331 = vpop.trf.xlu0
    %v332 = vpop.trf.xlu0
    %v333 = vpop.trf.xlu0
    %v334 = vpop.trf.xlu0
    %v335 = vpop.trf.xlu0
    %v336 = vpop.trf.xlu0
    %337 = vxpose.xlu0.b32.start [1/16] %v223, 128
    %338 = vxpose.xlu0.b32.cont [2/16] %v228, 128
    %339 = vxpose.xlu0.b32.cont [3/16] 0.0, 128
    %340 = vxpose.xlu0.b32.cont [4/16] 0.0, 128
    %341 = vxpose.xlu0.b32.cont [5/16] 0.0, 128
    %342 = vxpose.xlu0.b32.cont [6/16] 0.0, 128
    %343 = vxpose.xlu0.b32.cont [7/16] 0.0, 128
    %344 = vxpose.xlu0.b32.cont [8/16] 0.0, 128
    %345 = vxpose.xlu0.b32.cont [9/16] 0.0, 128
    %346 = vxpose.xlu0.b32.cont [10/16] 0.0, 128
    %347 = vxpose.xlu0.b32.cont [11/16] 0.0, 128
    %348 = vxpose.xlu0.b32.cont [12/16] 0.0, 128
    %349 = vxpose.xlu0.b32.cont [13/16] 0.0, 128
    %350 = vxpose.xlu0.b32.cont [14/16] 0.0, 128
    %351 = vxpose.xlu0.b32.cont [15/16] 0.0, 128
    %352 = vxpose.xlu0.b32.end [16/16] 0.0, 128
    %v353 = vpop.trf.xlu0
    %v354 = vpop.trf.xlu0
    %v355 = vpop.trf.xlu0
    %v356 = vpop.trf.xlu0
    %v357 = vpop.trf.xlu0
    %v358 = vpop.trf.xlu0
    %v359 = vpop.trf.xlu0
    %v360 = vpop.trf.xlu0
    %v361 = vpop.trf.xlu0
    %v362 = vpop.trf.xlu0
    %v363 = vpop.trf.xlu0
    %v364 = vpop.trf.xlu0
    %v365 = vpop.trf.xlu0
    %v366 = vpop.trf.xlu0
    %v367 = vpop.trf.xlu0
    %v368 = vpop.trf.xlu0
    %369 = vxpose.xlu0.b32.start [1/16] %v233, 128
    %370 = vxpose.xlu0.b32.cont [2/16] %v238, 128
    %371 = vxpose.xlu0.b32.cont [3/16] 0.0, 128
    %372 = vxpose.xlu0.b32.cont [4/16] 0.0, 128
    %373 = vxpose.xlu0.b32.cont [5/16] 0.0, 128
    %374 = vxpose.xlu0.b32.cont [6/16] 0.0, 128
    %375 = vxpose.xlu0.b32.cont [7/16] 0.0, 128
    %376 = vxpose.xlu0.b32.cont [8/16] 0.0, 128
    %377 = vxpose.xlu0.b32.cont [9/16] 0.0, 128
    %378 = vxpose.xlu0.b32.cont [10/16] 0.0, 128
    %379 = vxpose.xlu0.b32.cont [11/16] 0.0, 128
    %380 = vxpose.xlu0.b32.cont [12/16] 0.0, 128
    %381 = vxpose.xlu0.b32.cont [13/16] 0.0, 128
    %382 = vxpose.xlu0.b32.cont [14/16] 0.0, 128
    %383 = vxpose.xlu0.b32.cont [15/16] 0.0, 128
    %384 = vxpose.xlu0.b32.end [16/16] 0.0, 128
    %v385 = vpop.trf.xlu0
    %v386 = vpop.trf.xlu0
    %v387 = vpop.trf.xlu0
    %v388 = vpop.trf.xlu0
    %v389 = vpop.trf.xlu0
    %v390 = vpop.trf.xlu0
    %v391 = vpop.trf.xlu0
    %v392 = vpop.trf.xlu0
    %v393 = vpop.trf.xlu0
    %v394 = vpop.trf.xlu0
    %v395 = vpop.trf.xlu0
    %v396 = vpop.trf.xlu0
    %v397 = vpop.trf.xlu0
    %v398 = vpop.trf.xlu0
    %v399 = vpop.trf.xlu0
    %v400 = vpop.trf.xlu0
    %v401 = vld [vmem:[#allocation8] sm:$0xff]
    %v402 = vld [vmem:[#allocation8 + $0x8] sm:$0xff]
    %vm403 = vcmask 130048
    %v405 = vsel %vm403, %v257, 0
    %v408 = vsel %vm403, %v258, 0
    %v411 = vsel %vm403, %v259, 0
    %v414 = vsel %vm403, %v260, 0
    %v417 = vsel %vm403, %v261, 0
    %v420 = vsel %vm403, %v262, 0
    %v423 = vsel %vm403, %v263, 0
    %v426 = vsel %vm403, %v264, 0
    %v429 = vsel %vm403, %v265, 0
    %v432 = vsel %vm403, %v266, 0
    %v435 = vsel %vm403, %v267, 0
    %v438 = vsel %vm403, %v268, 0
    %v441 = vsel %vm403, %v289, 0
    %v444 = vsel %vm403, %v290, 0
    %v447 = vsel %vm403, %v291, 0
    %v450 = vsel %vm403, %v292, 0
    %v453 = vsel %vm403, %v293, 0
    %v456 = vsel %vm403, %v294, 0
    %v459 = vsel %vm403, %v295, 0
    %v462 = vsel %vm403, %v296, 0
    %v465 = vsel %vm403, %v297, 0
    %v468 = vsel %vm403, %v298, 0
    %v471 = vsel %vm403, %v299, 0
    %v474 = vsel %vm403, %v300, 0
    %v477 = vsel %vm403, %v321, 0
    %v480 = vsel %vm403, %v322, 0
    %v483 = vsel %vm403, %v323, 0
    %v486 = vsel %vm403, %v324, 0
    %v489 = vsel %vm403, %v325, 0
    %v492 = vsel %vm403, %v326, 0
    %v495 = vsel %vm403, %v327, 0
    %v498 = vsel %vm403, %v328, 0
    %v501 = vsel %vm403, %v329, 0
    %v504 = vsel %vm403, %v330, 0
    %v507 = vsel %vm403, %v331, 0
    %v510 = vsel %vm403, %v332, 0
    %v513 = vsel %vm403, %v353, 0
    %v516 = vsel %vm403, %v354, 0
    %v519 = vsel %vm403, %v355, 0
    %v522 = vsel %vm403, %v356, 0
    %v525 = vsel %vm403, %v357, 0
    %v528 = vsel %vm403, %v358, 0
    %v531 = vsel %vm403, %v359, 0
    %v534 = vsel %vm403, %v360, 0
    %v537 = vsel %vm403, %v361, 0
    %v540 = vsel %vm403, %v362, 0
    %v543 = vsel %vm403, %v363, 0
    %v546 = vsel %vm403, %v364, 0
    %v549 = vsel %vm403, %v385, 0
    %v552 = vsel %vm403, %v386, 0
    %v555 = vsel %vm403, %v387, 0
    %v558 = vsel %vm403, %v388, 0
    %v561 = vsel %vm403, %v389, 0
    %v564 = vsel %vm403, %v390, 0
    %v567 = vsel %vm403, %v391, 0
    %v570 = vsel %vm403, %v392, 0
    %v573 = vsel %vm403, %v393, 0
    %v576 = vsel %vm403, %v394, 0
    %v579 = vsel %vm403, %v395, 0
    %v582 = vsel %vm403, %v396, 0
    %584 = vmatprep.subr.mxu0 0.0
    %585 = vmatpush1.msra.mxu0 %v401
    %586 = vmatprep.subr.mxu0 0.0
    %587 = vmatpush1.msra.mxu0 %v402
    %588 = vmatprep.subr.mxu0 0.0
    %589 = vmatpush1.msra.mxu0 0.0
    %590 = vmatprep.subr.mxu0 0.0
    %591 = vmatpush1.msra.mxu0 0.0
    %592 = vmatprep.subr.mxu0 0.0
    %593 = vmatpush1.msra.mxu0 0.0
    %594 = vmatprep.subr.mxu0 0.0
    %595 = vmatpush1.msra.mxu0 0.0
    %596 = vmatprep.subr.mxu0 0.0
    %597 = vmatpush1.msra.mxu0 0.0
    %598 = vmatprep.subr.mxu0 0.0
    %599 = vmatpush1.msra.mxu0 0.0
    %600 = vmatprep.subr.mxu0 0.0
    %601 = vmatpush1.msra.mxu0 0.0
    %602 = vmatprep.subr.mxu0 0.0
    %603 = vmatpush1.msra.mxu0 0.0
    %604 = vmatprep.subr.mxu0 0.0
    %605 = vmatpush1.msra.mxu0 0.0
    %606 = vmatprep.subr.mxu0 0.0
    %607 = vmatpush1.msra.mxu0 0.0
    %608 = vmatprep.subr.mxu0 0.0
    %609 = vmatpush1.msra.mxu0 0.0
    %610 = vmatprep.subr.mxu0 0.0
    %611 = vmatpush1.msra.mxu0 0.0
    %612 = vmatprep.subr.mxu0 0.0
    %613 = vmatpush1.msra.mxu0 0.0
    %614 = vmatprep.subr.mxu0 0.0
    %615 = vmatpush1.msra.mxu0 0.0
    %616 = vmatprep.subr.mxu0 0.0
    %617 = vmatpush1.msra.mxu0 0.0
    %618 = vmatprep.subr.mxu0 0.0
    %619 = vmatpush1.msra.mxu0 0.0
    %620 = vmatprep.subr.mxu0 0.0
    %621 = vmatpush1.msra.mxu0 0.0
    %622 = vmatprep.subr.mxu0 0.0
    %623 = vmatpush1.msra.mxu0 0.0
    %624 = vmatprep.subr.mxu0 0.0
    %625 = vmatpush1.msra.mxu0 0.0
    %626 = vmatprep.subr.mxu0 0.0
    %627 = vmatpush1.msra.mxu0 0.0
    %628 = vmatprep.subr.mxu0 0.0
    %629 = vmatpush1.msra.mxu0 0.0
    %630 = vmatprep.subr.mxu0 0.0
    %631 = vmatpush1.msra.mxu0 0.0
    %632 = vmatprep.subr.mxu0 0.0
    %633 = vmatpush1.msra.mxu0 0.0
    %634 = vmatprep.subr.mxu0 0.0
    %635 = vmatpush1.msra.mxu0 0.0
    %636 = vmatprep.subr.mxu0 0.0
    %637 = vmatpush1.msra.mxu0 0.0
    %638 = vmatprep.subr.mxu0 0.0
    %639 = vmatpush1.msra.mxu0 0.0
    %640 = vmatprep.subr.mxu0 0.0
    %641 = vmatpush1.msra.mxu0 0.0
    %642 = vmatprep.subr.mxu0 0.0
    %643 = vmatpush1.msra.mxu0 0.0
    %644 = vmatprep.subr.mxu0 0.0
    %645 = vmatpush1.msra.mxu0 0.0
    %646 = vmatprep.subr.mxu0 0.0
    %647 = vmatpush1.msra.mxu0 0.0
    %648 = vmatprep.mubr.f32.mxu0 0.0
    %649 = vmatmul.mubr.f32.gmra.mrb[0].mxu0 %v405
    %v650 = vpop.f32.mrb[0].mxu0
    %v651 = vadd.f32 0.0, %v650
    %v652 = vpop.f32.mrb[0].mxu0
    %653 = vmatprep.mubr.f32.mxu0 0.0
    %654 = vmatmul.mubr.f32.gmra.mrb[0].mxu0 %v408
    %v655 = vpop.f32.mrb[0].mxu0
    %v656 = vadd.f32 0.0, %v655
    %v657 = vpop.f32.mrb[0].mxu0
    %658 = vmatprep.mubr.f32.mxu0 0.0
    %659 = vmatmul.mubr.f32.gmra.mrb[0].mxu0 %v411
    %v660 = vpop.f32.mrb[0].mxu0
    %v661 = vadd.f32 0.0, %v660
    %v662 = vpop.f32.mrb[0].mxu0
    %663 = vmatprep.mubr.f32.mxu0 0.0
    %664 = vmatmul.mubr.f32.gmra.mrb[0].mxu0 %v414
    %v665 = vpop.f32.mrb[0].mxu0
    %v666 = vadd.f32 0.0, %v665
    %v667 = vpop.f32.mrb[0].mxu0
    %668 = vmatprep.mubr.f32.mxu0 0.0
    %669 = vmatmul.mubr.f32.gmra.mrb[0].mxu0 %v417
    %v670 = vpop.f32.mrb[0].mxu0
    %v671 = vadd.f32 0.0, %v670
    %v672 = vpop.f32.mrb[0].mxu0
    %673 = vmatprep.mubr.f32.mxu0 0.0
    %674 = vmatmul.mubr.f32.gmra.mrb[0].mxu0 %v420
    %v675 = vpop.f32.mrb[0].mxu0
    %v676 = vadd.f32 0.0, %v675
    %v677 = vpop.f32.mrb[0].mxu0
    %678 = vmatprep.mubr.f32.mxu0 0.0
    %679 = vmatmul.mubr.f32.gmra.mrb[0].mxu0 %v423
    %v680 = vpop.f32.mrb[0].mxu0
    %v681 = vadd.f32 0.0, %v680
    %v682 = vpop.f32.mrb[0].mxu0
    %683 = vmatprep.mubr.f32.mxu0 0.0
    %684 = vmatmul.mubr.f32.gmra.mrb[0].mxu0 %v426
    %v685 = vpop.f32.mrb[0].mxu0
    %v686 = vadd.f32 0.0, %v685
    %v687 = vpop.f32.mrb[0].mxu0
    %688 = vmatprep.mubr.f32.mxu0 0.0
    %689 = vmatmul.mubr.f32.gmra.mrb[0].mxu0 %v429
    %v690 = vpop.f32.mrb[0].mxu0
    %v691 = vadd.f32 0.0, %v690
    %v692 = vpop.f32.mrb[0].mxu0
    %693 = vmatprep.mubr.f32.mxu0 0.0
    %694 = vmatmul.mubr.f32.gmra.mrb[0].mxu0 %v432
    %v695 = vpop.f32.mrb[0].mxu0
    %v696 = vadd.f32 0.0, %v695
    %v697 = vpop.f32.mrb[0].mxu0
    %698 = vmatprep.mubr.f32.mxu0 0.0
    %699 = vmatmul.mubr.f32.gmra.mrb[0].mxu0 %v435
    %v700 = vpop.f32.mrb[0].mxu0
    %v701 = vadd.f32 0.0, %v700
    %v702 = vpop.f32.mrb[0].mxu0
    %703 = vmatprep.mubr.f32.mxu0 0.0
    %704 = vmatmul.mubr.f32.gmra.mrb[0].mxu0 %v438
    %v705 = vpop.f32.mrb[0].mxu0
    %v706 = vadd.f32 0.0, %v705
    %v707 = vpop.f32.mrb[0].mxu0
    %708 = vmatprep.mubr.f32.mxu0 0.0
    %709 = vmatmul.mubr.f32.gmra.mrb[0].mxu0 %v441
    %v710 = vpop.f32.mrb[0].mxu0
    %v711 = vadd.f32 0.0, %v710
    %v712 = vpop.f32.mrb[0].mxu0
    %713 = vmatprep.mubr.f32.mxu0 0.0
    %714 = vmatmul.mubr.f32.gmra.mrb[0].mxu0 %v444
    %v715 = vpop.f32.mrb[0].mxu0
    %v716 = vadd.f32 0.0, %v715
    %v717 = vpop.f32.mrb[0].mxu0
    %718 = vmatprep.mubr.f32.mxu0 0.0
    %719 = vmatmul.mubr.f32.gmra.mrb[0].mxu0 %v447
    %v720 = vpop.f32.mrb[0].mxu0
    %v721 = vadd.f32 0.0, %v720
    %v722 = vpop.f32.mrb[0].mxu0
    %723 = vmatprep.mubr.f32.mxu0 0.0
    %724 = vmatmul.mubr.f32.gmra.mrb[0].mxu0 %v450
    %v725 = vpop.f32.mrb[0].mxu0
    %v726 = vadd.f32 0.0, %v725
    %v727 = vpop.f32.mrb[0].mxu0
    %728 = vmatprep.mubr.f32.mxu0 0.0
    %729 = vmatmul.mubr.f32.gmra.mrb[0].mxu0 %v453
    %v730 = vpop.f32.mrb[0].mxu0
    %v731 = vadd.f32 0.0, %v730
    %v732 = vpop.f32.mrb[0].mxu0
    %733 = vmatprep.mubr.f32.mxu0 0.0
    %734 = vmatmul.mubr.f32.gmra.mrb[0].mxu0 %v456
    %v735 = vpop.f32.mrb[0].mxu0
    %v736 = vadd.f32 0.0, %v735
    %v737 = vpop.f32.mrb[0].mxu0
    %738 = vmatprep.mubr.f32.mxu0 0.0
    %739 = vmatmul.mubr.f32.gmra.mrb[0].mxu0 %v459
    %v740 = vpop.f32.mrb[0].mxu0
    %v741 = vadd.f32 0.0, %v740
    %v742 = vpop.f32.mrb[0].mxu0
    %743 = vmatprep.mubr.f32.mxu0 0.0
    %744 = vmatmul.mubr.f32.gmra.mrb[0].mxu0 %v462
    %v745 = vpop.f32.mrb[0].mxu0
    %v746 = vadd.f32 0.0, %v745
    %v747 = vpop.f32.mrb[0].mxu0
    %748 = vmatprep.mubr.f32.mxu0 0.0
    %749 = vmatmul.mubr.f32.gmra.mrb[0].mxu0 %v465
    %v750 = vpop.f32.mrb[0].mxu0
    %v751 = vadd.f32 0.0, %v750
    %v752 = vpop.f32.mrb[0].mxu0
    %753 = vmatprep.mubr.f32.mxu0 0.0
    %754 = vmatmul.mubr.f32.gmra.mrb[0].mxu0 %v468
    %v755 = vpop.f32.mrb[0].mxu0
    %v756 = vadd.f32 0.0, %v755
    %v757 = vpop.f32.mrb[0].mxu0
    %758 = vmatprep.mubr.f32.mxu0 0.0
    %759 = vmatmul.mubr.f32.gmra.mrb[0].mxu0 %v471
    %v760 = vpop.f32.mrb[0].mxu0
    %v761 = vadd.f32 0.0, %v760
    %v762 = vpop.f32.mrb[0].mxu0
    %763 = vmatprep.mubr.f32.mxu0 0.0
    %764 = vmatmul.mubr.f32.gmra.mrb[0].mxu0 %v474
    %v765 = vpop.f32.mrb[0].mxu0
    %v766 = vadd.f32 0.0, %v765
    %v767 = vpop.f32.mrb[0].mxu0
    %768 = vmatprep.mubr.f32.mxu0 0.0
    %769 = vmatmul.mubr.f32.gmra.mrb[0].mxu0 %v477
    %v770 = vpop.f32.mrb[0].mxu0
    %v771 = vadd.f32 0.0, %v770
    %v772 = vpop.f32.mrb[0].mxu0
    %773 = vmatprep.mubr.f32.mxu0 0.0
    %774 = vmatmul.mubr.f32.gmra.mrb[0].mxu0 %v480
    %v775 = vpop.f32.mrb[0].mxu0
    %v776 = vadd.f32 0.0, %v775
    %v777 = vpop.f32.mrb[0].mxu0
    %778 = vmatprep.mubr.f32.mxu0 0.0
    %779 = vmatmul.mubr.f32.gmra.mrb[0].mxu0 %v483
    %v780 = vpop.f32.mrb[0].mxu0
    %v781 = vadd.f32 0.0, %v780
    %v782 = vpop.f32.mrb[0].mxu0
    %783 = vmatprep.mubr.f32.mxu0 0.0
    %784 = vmatmul.mubr.f32.gmra.mrb[0].mxu0 %v486
    %v785 = vpop.f32.mrb[0].mxu0
    %v786 = vadd.f32 0.0, %v785
    %v787 = vpop.f32.mrb[0].mxu0
    %788 = vmatprep.mubr.f32.mxu0 0.0
    %789 = vmatmul.mubr.f32.gmra.mrb[0].mxu0 %v489
    %v790 = vpop.f32.mrb[0].mxu0
    %v791 = vadd.f32 0.0, %v790
    %v792 = vpop.f32.mrb[0].mxu0
    %793 = vmatprep.mubr.f32.mxu0 0.0
    %794 = vmatmul.mubr.f32.gmra.mrb[0].mxu0 %v492
    %v795 = vpop.f32.mrb[0].mxu0
    %v796 = vadd.f32 0.0, %v795
    %v797 = vpop.f32.mrb[0].mxu0
    %798 = vmatprep.mubr.f32.mxu0 0.0
    %799 = vmatmul.mubr.f32.gmra.mrb[0].mxu0 %v495
    %v800 = vpop.f32.mrb[0].mxu0
    %v801 = vadd.f32 0.0, %v800
    %v802 = vpop.f32.mrb[0].mxu0
    %803 = vmatprep.mubr.f32.mxu0 0.0
    %804 = vmatmul.mubr.f32.gmra.mrb[0].mxu0 %v498
    %v805 = vpop.f32.mrb[0].mxu0
    %v806 = vadd.f32 0.0, %v805
    %v807 = vpop.f32.mrb[0].mxu0
    %808 = vmatprep.mubr.f32.mxu0 0.0
    %809 = vmatmul.mubr.f32.gmra.mrb[0].mxu0 %v501
    %v810 = vpop.f32.mrb[0].mxu0
    %v811 = vadd.f32 0.0, %v810
    %v812 = vpop.f32.mrb[0].mxu0
    %813 = vmatprep.mubr.f32.mxu0 0.0
    %814 = vmatmul.mubr.f32.gmra.mrb[0].mxu0 %v504
    %v815 = vpop.f32.mrb[0].mxu0
    %v816 = vadd.f32 0.0, %v815
    %v817 = vpop.f32.mrb[0].mxu0
    %818 = vmatprep.mubr.f32.mxu0 0.0
    %819 = vmatmul.mubr.f32.gmra.mrb[0].mxu0 %v507
    %v820 = vpop.f32.mrb[0].mxu0
    %v821 = vadd.f32 0.0, %v820
    %v822 = vpop.f32.mrb[0].mxu0
    %823 = vmatprep.mubr.f32.mxu0 0.0
    %824 = vmatmul.mubr.f32.gmra.mrb[0].mxu0 %v510
    %v825 = vpop.f32.mrb[0].mxu0
    %v826 = vadd.f32 0.0, %v825
    %v827 = vpop.f32.mrb[0].mxu0
    %828 = vmatprep.mubr.f32.mxu0 0.0
    %829 = vmatmul.mubr.f32.gmra.mrb[0].mxu0 %v513
    %v830 = vpop.f32.mrb[0].mxu0
    %v831 = vadd.f32 0.0, %v830
    %v832 = vpop.f32.mrb[0].mxu0
    %833 = vmatprep.mubr.f32.mxu0 0.0
    %834 = vmatmul.mubr.f32.gmra.mrb[0].mxu0 %v516
    %v835 = vpop.f32.mrb[0].mxu0
    %v836 = vadd.f32 0.0, %v835
    %v837 = vpop.f32.mrb[0].mxu0
    %838 = vmatprep.mubr.f32.mxu0 0.0
    %839 = vmatmul.mubr.f32.gmra.mrb[0].mxu0 %v519
    %v840 = vpop.f32.mrb[0].mxu0
    %v841 = vadd.f32 0.0, %v840
    %v842 = vpop.f32.mrb[0].mxu0
    %843 = vmatprep.mubr.f32.mxu0 0.0
    %844 = vmatmul.mubr.f32.gmra.mrb[0].mxu0 %v522
    %v845 = vpop.f32.mrb[0].mxu0
    %v846 = vadd.f32 0.0, %v845
    %v847 = vpop.f32.mrb[0].mxu0
    %848 = vmatprep.mubr.f32.mxu0 0.0
    %849 = vmatmul.mubr.f32.gmra.mrb[0].mxu0 %v525
    %v850 = vpop.f32.mrb[0].mxu0
    %v851 = vadd.f32 0.0, %v850
    %v852 = vpop.f32.mrb[0].mxu0
    %853 = vmatprep.mubr.f32.mxu0 0.0
    %854 = vmatmul.mubr.f32.gmra.mrb[0].mxu0 %v528
    %v855 = vpop.f32.mrb[0].mxu0
    %v856 = vadd.f32 0.0, %v855
    %v857 = vpop.f32.mrb[0].mxu0
    %858 = vmatprep.mubr.f32.mxu0 0.0
    %859 = vmatmul.mubr.f32.gmra.mrb[0].mxu0 %v531
    %v860 = vpop.f32.mrb[0].mxu0
    %v861 = vadd.f32 0.0, %v860
    %v862 = vpop.f32.mrb[0].mxu0
    %863 = vmatprep.mubr.f32.mxu0 0.0
    %864 = vmatmul.mubr.f32.gmra.mrb[0].mxu0 %v534
    %v865 = vpop.f32.mrb[0].mxu0
    %v866 = vadd.f32 0.0, %v865
    %v867 = vpop.f32.mrb[0].mxu0
    %868 = vmatprep.mubr.f32.mxu0 0.0
    %869 = vmatmul.mubr.f32.gmra.mrb[0].mxu0 %v537
    %v870 = vpop.f32.mrb[0].mxu0
    %v871 = vadd.f32 0.0, %v870
    %v872 = vpop.f32.mrb[0].mxu0
    %873 = vmatprep.mubr.f32.mxu0 0.0
    %874 = vmatmul.mubr.f32.gmra.mrb[0].mxu0 %v540
    %v875 = vpop.f32.mrb[0].mxu0
    %v876 = vadd.f32 0.0, %v875
    %v877 = vpop.f32.mrb[0].mxu0
    %878 = vmatprep.mubr.f32.mxu0 0.0
    %879 = vmatmul.mubr.f32.gmra.mrb[0].mxu0 %v543
    %v880 = vpop.f32.mrb[0].mxu0
    %v881 = vadd.f32 0.0, %v880
    %v882 = vpop.f32.mrb[0].mxu0
    %883 = vmatprep.mubr.f32.mxu0 0.0
    %884 = vmatmul.mubr.f32.gmra.mrb[0].mxu0 %v546
    %v885 = vpop.f32.mrb[0].mxu0
    %v886 = vadd.f32 0.0, %v885
    %v887 = vpop.f32.mrb[0].mxu0
    %888 = vmatprep.mubr.f32.mxu0 0.0
    %889 = vmatmul.mubr.f32.gmra.mrb[0].mxu0 %v549
    %v890 = vpop.f32.mrb[0].mxu0
    %v891 = vadd.f32 0.0, %v890
    %v892 = vpop.f32.mrb[0].mxu0
    %893 = vmatprep.mubr.f32.mxu0 0.0
    %894 = vmatmul.mubr.f32.gmra.mrb[0].mxu0 %v552
    %v895 = vpop.f32.mrb[0].mxu0
    %v896 = vadd.f32 0.0, %v895
    %v897 = vpop.f32.mrb[0].mxu0
    %898 = vmatprep.mubr.f32.mxu0 0.0
    %899 = vmatmul.mubr.f32.gmra.mrb[0].mxu0 %v555
    %v900 = vpop.f32.mrb[0].mxu0
    %v901 = vadd.f32 0.0, %v900
    %v902 = vpop.f32.mrb[0].mxu0
    %903 = vmatprep.mubr.f32.mxu0 0.0
    %904 = vmatmul.mubr.f32.gmra.mrb[0].mxu0 %v558
    %v905 = vpop.f32.mrb[0].mxu0
    %v906 = vadd.f32 0.0, %v905
    %v907 = vpop.f32.mrb[0].mxu0
    %908 = vmatprep.mubr.f32.mxu0 0.0
    %909 = vmatmul.mubr.f32.gmra.mrb[0].mxu0 %v561
    %v910 = vpop.f32.mrb[0].mxu0
    %v911 = vadd.f32 0.0, %v910
    %v912 = vpop.f32.mrb[0].mxu0
    %913 = vmatprep.mubr.f32.mxu0 0.0
    %914 = vmatmul.mubr.f32.gmra.mrb[0].mxu0 %v564
    %v915 = vpop.f32.mrb[0].mxu0
    %v916 = vadd.f32 0.0, %v915
    %v917 = vpop.f32.mrb[0].mxu0
    %918 = vmatprep.mubr.f32.mxu0 0.0
    %919 = vmatmul.mubr.f32.gmra.mrb[0].mxu0 %v567
    %v920 = vpop.f32.mrb[0].mxu0
    %v921 = vadd.f32 0.0, %v920
    %v922 = vpop.f32.mrb[0].mxu0
    %923 = vmatprep.mubr.f32.mxu0 0.0
    %924 = vmatmul.mubr.f32.gmra.mrb[0].mxu0 %v570
    %v925 = vpop.f32.mrb[0].mxu0
    %v926 = vadd.f32 0.0, %v925
    %v927 = vpop.f32.mrb[0].mxu0
    %928 = vmatprep.mubr.f32.mxu0 0.0
    %929 = vmatmul.mubr.f32.gmra.mrb[0].mxu0 %v573
    %v930 = vpop.f32.mrb[0].mxu0
    %v931 = vadd.f32 0.0, %v930
    %v932 = vpop.f32.mrb[0].mxu0
    %933 = vmatprep.mubr.f32.mxu0 0.0
    %934 = vmatmul.mubr.f32.gmra.mrb[0].mxu0 %v576
    %v935 = vpop.f32.mrb[0].mxu0
    %v936 = vadd.f32 0.0, %v935
    %v937 = vpop.f32.mrb[0].mxu0
    %938 = vmatprep.mubr.f32.mxu0 0.0
    %939 = vmatmul.mubr.f32.gmra.mrb[0].mxu0 %v579
    %v940 = vpop.f32.mrb[0].mxu0
    %v941 = vadd.f32 0.0, %v940
    %v942 = vpop.f32.mrb[0].mxu0
    %943 = vmatprep.mubr.f32.mxu0 0.0
    %944 = vmatmul.mubr.f32.gmra.mrb[0].mxu0 %v582
    %v945 = vpop.f32.mrb[0].mxu0
    %v946 = vadd.f32 0.0, %v945
    %v947 = vpop.f32.mrb[0].mxu0
    %948 = vdwg.mxu0
    %v949 = vmul.f32 %v651, %v651
    %v950 = vmul.f32 %v656, %v656
    %v951 = vmul.f32 %v661, %v661
    %v952 = vmul.f32 %v666, %v666
    %v953 = vmul.f32 %v671, %v671
    %v954 = vmul.f32 %v676, %v676
    %v955 = vmul.f32 %v681, %v681
    %v956 = vmul.f32 %v686, %v686
    %v957 = vmul.f32 %v691, %v691
    %v958 = vmul.f32 %v696, %v696
    %v959 = vmul.f32 %v701, %v701
    %v960 = vmul.f32 %v706, %v706
    %v961 = vmul.f32 %v711, %v711
    %v962 = vmul.f32 %v716, %v716
    %v963 = vmul.f32 %v721, %v721
    %v964 = vmul.f32 %v726, %v726
    %v965 = vmul.f32 %v731, %v731
    %v966 = vmul.f32 %v736, %v736
    %v967 = vmul.f32 %v741, %v741
    %v968 = vmul.f32 %v746, %v746
    %v969 = vmul.f32 %v751, %v751
    %v970 = vmul.f32 %v756, %v756
    %v971 = vmul.f32 %v761, %v761
    %v972 = vmul.f32 %v766, %v766
    %v973 = vmul.f32 %v651, %v711
    %v974 = vmul.f32 %v656, %v716
    %v975 = vmul.f32 %v661, %v721
    %v976 = vmul.f32 %v666, %v726
    %v977 = vmul.f32 %v671, %v731
    %v978 = vmul.f32 %v676, %v736
    %v979 = vmul.f32 %v681, %v741
    %v980 = vmul.f32 %v686, %v746
    %v981 = vmul.f32 %v691, %v751
    %v982 = vmul.f32 %v696, %v756
    %v983 = vmul.f32 %v701, %v761
    %v984 = vmul.f32 %v706, %v766
    %v985 = vsub.f32 %v771, %v949
    %v986 = vsub.f32 %v776, %v950
    %v987 = vsub.f32 %v781, %v951
    %v988 = vsub.f32 %v786, %v952
    %v989 = vsub.f32 %v791, %v953
    %v990 = vsub.f32 %v796, %v954
    %v991 = vsub.f32 %v801, %v955
    %v992 = vsub.f32 %v806, %v956
    %v993 = vsub.f32 %v811, %v957
    %v994 = vsub.f32 %v816, %v958
    %v995 = vsub.f32 %v821, %v959
    %v996 = vsub.f32 %v826, %v960
    %v997 = vsub.f32 %v831, %v961
    %v998 = vsub.f32 %v836, %v962
    %v999 = vsub.f32 %v841, %v963
    %v1000 = vsub.f32 %v846, %v964
    %v1001 = vsub.f32 %v851, %v965
    %v1002 = vsub.f32 %v856, %v966
    %v1003 = vsub.f32 %v861, %v967
    %v1004 = vsub.f32 %v866, %v968
    %v1005 = vsub.f32 %v871, %v969
    %v1006 = vsub.f32 %v876, %v970
    %v1007 = vsub.f32 %v881, %v971
    %v1008 = vsub.f32 %v886, %v972
    %v1009 = vsub.f32 %v891, %v973
    %v1010 = vsub.f32 %v896, %v974
    %v1011 = vsub.f32 %v901, %v975
    %v1012 = vsub.f32 %v906, %v976
    %v1013 = vsub.f32 %v911, %v977
    %v1014 = vsub.f32 %v916, %v978
    %v1015 = vsub.f32 %v921, %v979
    %v1016 = vsub.f32 %v926, %v980
    %v1017 = vsub.f32 %v931, %v981
    %v1018 = vsub.f32 %v936, %v982
    %v1019 = vsub.f32 %v941, %v983
    %v1020 = vsub.f32 %v946, %v984
    %v1021 = vmul.f32 %v973, 2.0
    %v1022 = vmul.f32 %v974, 2.0
    %v1023 = vmul.f32 %v975, 2.0
    %v1024 = vmul.f32 %v976, 2.0
    %v1025 = vmul.f32 %v977, 2.0
    %v1026 = vmul.f32 %v978, 2.0
    %v1027 = vmul.f32 %v979, 2.0
    %v1028 = vmul.f32 %v980, 2.0
    %v1029 = vmul.f32 %v981, 2.0
    %v1030 = vmul.f32 %v982, 2.0
    %v1031 = vmul.f32 %v983, 2.0
    %v1032 = vmul.f32 %v984, 2.0
    %v1033 = vadd.f32 %v1021, 0.0001
    %v1034 = vadd.f32 %v1022, 0.0001
    %v1035 = vadd.f32 %v1023, 0.0001
    %v1036 = vadd.f32 %v1024, 0.0001
    %v1037 = vadd.f32 %v1025, 0.0001
    %v1038 = vadd.f32 %v1026, 0.0001
    %v1039 = vadd.f32 %v1027, 0.0001
    %v1040 = vadd.f32 %v1028, 0.0001
    %v1041 = vadd.f32 %v1029, 0.0001
    %v1042 = vadd.f32 %v1030, 0.0001
    %v1043 = vadd.f32 %v1031, 0.0001
    %v1044 = vadd.f32 %v1032, 0.0001
    %v1045 = vmul.f32 %v1009, 2.0
    %v1046 = vmul.f32 %v1010, 2.0
    %v1047 = vmul.f32 %v1011, 2.0
    %v1048 = vmul.f32 %v1012, 2.0
    %v1049 = vmul.f32 %v1013, 2.0
    %v1050 = vmul.f32 %v1014, 2.0
    %v1051 = vmul.f32 %v1015, 2.0
    %v1052 = vmul.f32 %v1016, 2.0
    %v1053 = vmul.f32 %v1017, 2.0
    %v1054 = vmul.f32 %v1018, 2.0
    %v1055 = vmul.f32 %v1019, 2.0
    %v1056 = vmul.f32 %v1020, 2.0
    %v1057 = vadd.f32 %v1045, 0.0009
    %v1058 = vadd.f32 %v1046, 0.0009
    %v1059 = vadd.f32 %v1047, 0.0009
    %v1060 = vadd.f32 %v1048, 0.0009
    %v1061 = vadd.f32 %v1049, 0.0009
    %v1062 = vadd.f32 %v1050, 0.0009
    %v1063 = vadd.f32 %v1051, 0.0009
    %v1064 = vadd.f32 %v1052, 0.0009
    %v1065 = vadd.f32 %v1053, 0.0009
    %v1066 = vadd.f32 %v1054, 0.0009
    %v1067 = vadd.f32 %v1055, 0.0009
    %v1068 = vadd.f32 %v1056, 0.0009
    %v1069 = vmul.f32 %v1033, %v1057
    %v1070 = vmul.f32 %v1034, %v1058
    %v1071 = vmul.f32 %v1035, %v1059
    %v1072 = vmul.f32 %v1036, %v1060
    %v1073 = vmul.f32 %v1037, %v1061
    %v1074 = vmul.f32 %v1038, %v1062
    %v1075 = vmul.f32 %v1039, %v1063
    %v1076 = vmul.f32 %v1040, %v1064
    %v1077 = vmul.f32 %v1041, %v1065
    %v1078 = vmul.f32 %v1042, %v1066
    %v1079 = vmul.f32 %v1043, %v1067
    %v1080 = vmul.f32 %v1044, %v1068
    %v1081 = vadd.f32 %v949, %v961
    %v1082 = vadd.f32 %v950, %v962
    %v1083 = vadd.f32 %v951, %v963
    %v1084 = vadd.f32 %v952, %v964
    %v1085 = vadd.f32 %v953, %v965
    %v1086 = vadd.f32 %v954, %v966
    %v1087 = vadd.f32 %v955, %v967
    %v1088 = vadd.f32 %v956, %v968
    %v1089 = vadd.f32 %v957, %v969
    %v1090 = vadd.f32 %v958, %v970
    %v1091 = vadd.f32 %v959, %v971
    %v1092 = vadd.f32 %v960, %v972
    %v1093 = vadd.f32 %v1081, 0.0001
    %v1094 = vadd.f32 %v1082, 0.0001
    %v1095 = vadd.f32 %v1083, 0.0001
    %v1096 = vadd.f32 %v1084, 0.0001
    %v1097 = vadd.f32 %v1085, 0.0001
    %v1098 = vadd.f32 %v1086, 0.0001
    %v1099 = vadd.f32 %v1087, 0.0001
    %v1100 = vadd.f32 %v1088, 0.0001
    %v1101 = vadd.f32 %v1089, 0.0001
    %v1102 = vadd.f32 %v1090, 0.0001
    %v1103 = vadd.f32 %v1091, 0.0001
    %v1104 = vadd.f32 %v1092, 0.0001
    %v1105 = vadd.f32 %v985, %v997
    %v1106 = vadd.f32 %v986, %v998
    %v1107 = vadd.f32 %v987, %v999
    %v1108 = vadd.f32 %v988, %v1000
    %v1109 = vadd.f32 %v989, %v1001
    %v1110 = vadd.f32 %v990, %v1002
    %v1111 = vadd.f32 %v991, %v1003
    %v1112 = vadd.f32 %v992, %v1004
    %v1113 = vadd.f32 %v993, %v1005
    %v1114 = vadd.f32 %v994, %v1006
    %v1115 = vadd.f32 %v995, %v1007
    %v1116 = vadd.f32 %v996, %v1008
    %v1117 = vadd.f32 %v1105, 0.0009
    %v1118 = vadd.f32 %v1106, 0.0009
    %v1119 = vadd.f32 %v1107, 0.0009
    %v1120 = vadd.f32 %v1108, 0.0009
    %v1121 = vadd.f32 %v1109, 0.0009
    %v1122 = vadd.f32 %v1110, 0.0009
    %v1123 = vadd.f32 %v1111, 0.0009
    %v1124 = vadd.f32 %v1112, 0.0009
    %v1125 = vadd.f32 %v1113, 0.0009
    %v1126 = vadd.f32 %v1114, 0.0009
    %v1127 = vadd.f32 %v1115, 0.0009
    %v1128 = vadd.f32 %v1116, 0.0009
    %v1129 = vmul.f32 %v1093, %v1117
    %v1130 = vmul.f32 %v1094, %v1118
    %v1131 = vmul.f32 %v1095, %v1119
    %v1132 = vmul.f32 %v1096, %v1120
    %v1133 = vmul.f32 %v1097, %v1121
    %v1134 = vmul.f32 %v1098, %v1122
    %v1135 = vmul.f32 %v1099, %v1123
    %v1136 = vmul.f32 %v1100, %v1124
    %v1137 = vmul.f32 %v1101, %v1125
    %v1138 = vmul.f32 %v1102, %v1126
    %v1139 = vmul.f32 %v1103, %v1127
    %v1140 = vmul.f32 %v1104, %v1128
    %v1141 = vrcp.pop %v1129
    %v1142 = vmul.f32 %v1069, %v1141
    %v1143 = vrcp.pop %v1130
    %v1144 = vmul.f32 %v1070, %v1143
    %v1145 = vrcp.pop %v1131
    %v1146 = vmul.f32 %v1071, %v1145
    %v1147 = vrcp.pop %v1132
    %v1148 = vmul.f32 %v1072, %v1147
    %v1149 = vrcp.pop %v1133
    %v1150 = vmul.f32 %v1073, %v1149
    %v1151 = vrcp.pop %v1134
    %v1152 = vmul.f32 %v1074, %v1151
    %v1153 = vrcp.pop %v1135
    %v1154 = vmul.f32 %v1075, %v1153
    %v1155 = vrcp.pop %v1136
    %v1156 = vmul.f32 %v1076, %v1155
    %v1157 = vrcp.pop %v1137
    %v1158 = vmul.f32 %v1077, %v1157
    %v1159 = vrcp.pop %v1138
    %v1160 = vmul.f32 %v1078, %v1159
    %v1161 = vrcp.pop %v1139
    %v1162 = vmul.f32 %v1079, %v1161
    %v1163 = vrcp.pop %v1140
    %v1164 = vmul.f32 %v1080, %v1163
    %v1165 = vsel %vm403, %v1142, 0.0
    %1166 = vadd.xlane.f32.xlu0 %v1165
    %v1167 = vpop.xlane.xlu0 %1166
    %v1168 = vsel %vm403, %v1144, 0.0
    %1169 = vadd.xlane.f32.xlu0 %v1168
    %v1170 = vpop.xlane.xlu0 %1169
    %v1171 = vsel %vm403, %v1146, 0.0
    %1172 = vadd.xlane.f32.xlu0 %v1171
    %v1173 = vpop.xlane.xlu0 %1172
    %v1174 = vsel %vm403, %v1148, 0.0
    %1175 = vadd.xlane.f32.xlu0 %v1174
    %v1176 = vpop.xlane.xlu0 %1175
    %v1177 = vsel %vm403, %v1150, 0.0
    %1178 = vadd.xlane.f32.xlu0 %v1177
    %v1179 = vpop.xlane.xlu0 %1178
    %v1180 = vsel %vm403, %v1152, 0.0
    %1181 = vadd.xlane.f32.xlu0 %v1180
    %v1182 = vpop.xlane.xlu0 %1181
    %v1183 = vsel %vm403, %v1154, 0.0
    %1184 = vadd.xlane.f32.xlu0 %v1183
    %v1185 = vpop.xlane.xlu0 %1184
    %v1186 = vsel %vm403, %v1156, 0.0
    %1187 = vadd.xlane.f32.xlu0 %v1186
    %v1188 = vpop.xlane.xlu0 %1187
    %v1189 = vsel %vm403, %v1158, 0.0
    %1190 = vadd.xlane.f32.xlu0 %v1189
    %v1191 = vpop.xlane.xlu0 %1190
    %v1192 = vsel %vm403, %v1160, 0.0
    %1193 = vadd.xlane.f32.xlu0 %v1192
    %v1194 = vpop.xlane.xlu0 %1193
    %v1195 = vsel %vm403, %v1162, 0.0
    %1196 = vadd.xlane.f32.xlu0 %v1195
    %v1197 = vpop.xlane.xlu0 %1196
    %v1198 = vsel %vm403, %v1164, 0.0
    %1199 = vadd.xlane.f32.xlu0 %v1198
    %v1200 = vpop.xlane.xlu0 %1199
    %v1213 = vlaneseq
    %v1214 = vand.u32 %v1213, 127
    %v1215 = vlaneseq
    %v1216 = vshrl.u32 %v1215, 7
    %v1217 = vsub.s32 %v1214, %v1216
    %v1218 = vrot.slane %v1167, %v1217
    %v1219 = vadd.s32 %v1214, 4294967288
    %v1220 = vlaneseq
    %v1221 = vshrl.u32 %v1220, 7
    %v1222 = vsub.s32 %v1219, %v1221
    %v1223 = vrot.slane %v1170, %v1222
    %vm1224 = vcmask 130112
    %v1225 = vsel %vm1224, %v1223, %v1218
    %v1226 = vadd.s32 %v1214, 4294967280
    %v1227 = vlaneseq
    %v1228 = vshrl.u32 %v1227, 7
    %v1229 = vsub.s32 %v1226, %v1228
    %v1230 = vrot.slane %v1173, %v1229
    %vm1231 = vcmask 195712
    %v1232 = vsel %vm1231, %v1230, %v1225
    %v1233 = vadd.s32 %v1214, 4294967272
    %v1234 = vlaneseq
    %v1235 = vshrl.u32 %v1234, 7
    %v1236 = vsub.s32 %v1233, %v1235
    %v1237 = vrot.slane %v1176, %v1236
    %vm1238 = vcmask 261312
    %v1239 = vsel %vm1238, %v1237, %v1232
    %v1240 = vadd.s32 %v1214, 4294967264
    %v1241 = vlaneseq
    %v1242 = vshrl.u32 %v1241, 7
    %v1243 = vsub.s32 %v1240, %v1242
    %v1244 = vrot.slane %v1179, %v1243
    %vm1245 = vcmask 326912
    %v1246 = vsel %vm1245, %v1244, %v1239
    %v1247 = vadd.s32 %v1214, 4294967256
    %v1248 = vlaneseq
    %v1249 = vshrl.u32 %v1248, 7
    %v1250 = vsub.s32 %v1247, %v1249
    %v1251 = vrot.slane %v1182, %v1250
    %vm1252 = vcmask 392512
    %v1253 = vsel %vm1252, %v1251, %v1246
    %v1254 = vadd.s32 %v1214, 4294967248
    %v1255 = vlaneseq
    %v1256 = vshrl.u32 %v1255, 7
    %v1257 = vsub.s32 %v1254, %v1256
    %v1258 = vrot.slane %v1185, %v1257
    %vm1259 = vcmask 458112
    %v1260 = vsel %vm1259, %v1258, %v1253
    %v1261 = vadd.s32 %v1214, 4294967240
    %v1262 = vlaneseq
    %v1263 = vshrl.u32 %v1262, 7
    %v1264 = vsub.s32 %v1261, %v1263
    %v1265 = vrot.slane %v1188, %v1264
    %vm1266 = vcmask 523712
    %v1267 = vsel %vm1266, %v1265, %v1260
    %v1268 = vadd.s32 %v1214, 4294967232
    %v1269 = vlaneseq
    %v1270 = vshrl.u32 %v1269, 7
    %v1271 = vsub.s32 %v1268, %v1270
    %v1272 = vrot.slane %v1191, %v1271
    %vm1273 = vcmask 589312
    %v1274 = vsel %vm1273, %v1272, %v1267
    %v1275 = vadd.s32 %v1214, 4294967224
    %v1276 = vlaneseq
    %v1277 = vshrl.u32 %v1276, 7
    %v1278 = vsub.s32 %v1275, %v1277
    %v1279 = vrot.slane %v1194, %v1278
    %vm1280 = vcmask 654912
    %v1281 = vsel %vm1280, %v1279, %v1274
    %v1282 = vadd.s32 %v1214, 4294967216
    %v1283 = vlaneseq
    %v1284 = vshrl.u32 %v1283, 7
    %v1285 = vsub.s32 %v1282, %v1284
    %v1286 = vrot.slane %v1197, %v1285
    %vm1287 = vcmask 720512
    %v1288 = vsel %vm1287, %v1286, %v1281
    %v1289 = vadd.s32 %v1214, 4294967208
    %v1290 = vlaneseq
    %v1291 = vshrl.u32 %v1290, 7
    %v1292 = vsub.s32 %v1289, %v1291
    %v1293 = vrot.slane %v1200, %v1292
    %vm1294 = vcmask 786112
    %v1295 = vsel %vm1294, %v1293, %v1288
    %vm1297 = vcmask 778240
    %1298 = vst.msk [vmem:[#allocation10] sm:$0x1] %vm1297, %v1295
    // Predicated region
    $region34: #{tpu_custom_call.1} parent=1 // pred_check
      _
    $region35: #{tpu_custom_call.1} parent=1 // pred_check_branch
      %1300 = sbr.rel (0) target = $region37
    $region36: #{tpu_custom_call.1} parent=1 // pred_region
      %s1302 = ssub.s32 16, 16
      %1303 = vsyncadd [#allocation4], %s1302
      %s1305 = sshll.u32 [#allocation10], 4
      %s1306 = int_to_ptr.vmem [resolvable:$true] %s1305
      %1308 = dma.vmem_to_hbm [thread:$0]  %s1306, 16, %s4, [#allocation4]
    $region37: #{tpu_custom_call.1} parent=1 // pred_fallthru
      _
    // Predicated region
    $region38: #{tpu_custom_call.1} parent=1 // pred_check
      _
    $region39: #{tpu_custom_call.1} parent=1 // pred_check_branch
      %1310 = sbr.rel (0) target = $region41
    $region40: #{tpu_custom_call.1} parent=1 // pred_region
      %1311 = dma.done [#allocation4], 16
    $region41: #{tpu_custom_call.1} parent=1 // pred_fallthru
      _
    %1312 = vsyncpa [#allocation3], 1
    %1313 = vsyncpa [#allocation6], 1
    %1314 = vsyncpa [#allocation9], 1
    %1315 = vsyncpa [#allocation4], 1

</llo_original>
